<compile_context>
chip_gen: v7x
topology: tpu7x:2x2x1
jax: 0.10.0
libtpu: 0.0.40
codegen_flags: <defaults>
</compile_context>

<pallas_src>
import jax
import jax.numpy as jnp
import numpy as np
from jax.experimental import pallas as pl
from jax.experimental.pallas import tpu as pltpu

_EPS = 1e-9  # CharbonnierLoss eps

# Sobel kernels from Sobel_Loss.__init__ (replicated over the 3 in-channels).
_SOBEL_X = ((1.0, 0.0, -1.0),
            (2.0, 0.0, -2.0),
            (1.0, 0.0, -1.0))
_SOBEL_Y = ((1.0, 2.0, 1.0),
            (0.0, 0.0, 0.0),
            (-1.0, -2.0, -1.0))


def _sobel_loss_kernel(xp_ref, yp_ref, out_ref):
    """One grid step = one image.

    xp_ref / yp_ref: (1, H+2, W+2) zero-padded, channel-summed image (VMEM).
    out_ref:         (1, 8, 128) f32 block; filled with this image's partial
                     Charbonnier sum (lane-dense unmasked store).
    """
    xp = xp_ref[0].astype(jnp.float32)   # (Hp, Wp)
    yp = yp_ref[0].astype(jnp.float32)
    Hp, Wp = xp.shape
    H, W = Hp - 2, Wp - 2

    def abs_grad(p):
        # Separable Sobel (cross-correlation, matching F.conv2d):
        #   gx = ([1,2,1]^T over rows) then ([1,0,-1] over cols)
        #   gy = ([1,0,-1]^T over rows) then ([1,2,1] over cols)
        r = p[0:H, :] + 2.0 * p[1:H + 1, :] + p[2:H + 2, :]     # (H, Wp)
        d = p[0:H, :] - p[2:H + 2, :]                           # (H, Wp)
        gx = r[:, 0:W] - r[:, 2:W + 2]                          # (H, W)
        gy = d[:, 0:W] + 2.0 * d[:, 1:W + 1] + d[:, 2:W + 2]    # (H, W)
        return jnp.abs(gx) + jnp.abs(gy)

    diff = abs_grad(xp) - abs_grad(yp)
    partial = jnp.sum(jnp.sqrt(diff * diff + _EPS))             # scalar f32

    out_ref[...] = jnp.broadcast_to(partial, out_ref.shape).astype(out_ref.dtype)


def sobel_loss(x, y):
    assert x.shape == y.shape and x.ndim == 4
    N, C, H, W = x.shape

    # Conv weight is identical across input channels -> sum channels first
    # (XLA fuses sum + pad into one pass; kernel DMA bytes drop ~3x).
    xs = jnp.sum(x, axis=1)                 # (N, H, W), keeps input dtype
    ys = jnp.sum(y, axis=1)

    # Put the longer spatial axis in the lane (last) dimension; the loss is
    # invariant under spatial transpose because sobel_x^T == sobel_y.
    if H > W:
        xs = jnp.transpose(xs, (0, 2, 1))
        ys = jnp.transpose(ys, (0, 2, 1))
    Hs, Ws = xs.shape[1], xs.shape[2]

    # Zero padding (Conv2d padding=1).
    xp = jnp.pad(xs, ((0, 0), (1, 1), (1, 1)))
    yp = jnp.pad(ys, ((0, 0), (1, 1), (1, 1)))
    Hp, Wp = Hs + 2, Ws + 2

    partials = pl.pallas_call(
        _sobel_loss_kernel,
        out_shape=jax.ShapeDtypeStruct((N, 8, 128), jnp.float32),
        grid=(N,),
        in_specs=[
            pl.BlockSpec((1, Hp, Wp), lambda n: (n, 0, 0)),
            pl.BlockSpec((1, Hp, Wp), lambda n: (n, 0, 0)),
        ],
        out_specs=pl.BlockSpec((1, 8, 128), lambda n: (n, 0, 0)),
        compiler_params=pltpu.CompilerParams(
            dimension_semantics=("parallel",),
        ),
    )(xp, yp)

    # Final mean over the true element count (N * H * W, single out channel).
    return jnp.sum(partials[:, 0, 0]) / (N * H * W)


if __name__ == "__main__":
    key = jax.random.PRNGKey(0)
    kx, ky = jax.random.split(key)
    N, C, H, W = 2, 3, 16, 16
    x = jax.random.normal(kx, (N, C, H, W), jnp.float32)
    y = jax.random.normal(ky, (N, C, H, W), jnp.float32)

    loss = jax.jit(sobel_loss)(x, y)
    jax.block_until_ready(loss)

    # Independent pure-JAX reference (identical semantics to the PyTorch forward).
    wx = jnp.broadcast_to(jnp.asarray(_SOBEL_X, jnp.float32), (1, 3, 3, 3))
    wy = jnp.broadcast_to(jnp.asarray(_SOBEL_Y, jnp.float32), (1, 3, 3, 3))

    def conv(img, w):
        return jax.lax.conv_general_dilated(
            img, w, window_strides=(1, 1), padding=((1, 1), (1, 1)),
            dimension_numbers=("NCHW", "OIHW", "NCHW"))

    g_x = jnp.abs(conv(x, wx)) + jnp.abs(conv(x, wy))
    g_y = jnp.abs(conv(y, wx)) + jnp.abs(conv(y, wy))
    ref = jnp.mean(jnp.sqrt((g_x - g_y) ** 2 + _EPS))

    np.testing.assert_allclose(np.asarray(loss), np.asarray(ref),
                               rtol=1e-4, atol=1e-5)
    print("KERNEL_OK")
</pallas_src>

<mosaic_0001>
module attributes {stable_mosaic.version = 11 : i64} {
  func.func @_sobel_loss_kernel(%arg0: i32, %arg1: memref<1x18x18xf32, #tpu.memory_space<vmem>>, %arg2: memref<1x18x18xf32, #tpu.memory_space<vmem>>, %arg3: memref<1x8x128xf32, #tpu.memory_space<vmem>>) attributes {dimension_semantics = [#tpu.dimension_semantics<parallel>], iteration_bounds = array<i64: 2>, scalar_prefetch = 0 : i64, scratch_operands = 0 : i64, tpu.core_type = #tpu.core_type<tc>, window_params = [{transform_indices = @transform_0, window_bounds = array<i64: 1, 18, 18>}, {transform_indices = @transform_1, window_bounds = array<i64: 1, 18, 18>}, {transform_indices = @transform_2, window_bounds = array<i64: 1, 8, 128>}]} {
    %c0 = arith.constant 0 : index
    %c0_0 = arith.constant 0 : index
    %c0_1 = arith.constant 0 : index
    %0 = vector.load %arg1[%c0, %c0_0, %c0_1] : memref<1x18x18xf32, #tpu.memory_space<vmem>>, vector<1x18x18xf32>
    %1 = vector.shape_cast %0 : vector<1x18x18xf32> to vector<18x18xf32>
    %c0_2 = arith.constant 0 : index
    %c0_3 = arith.constant 0 : index
    %c0_4 = arith.constant 0 : index
    %2 = vector.load %arg2[%c0_2, %c0_3, %c0_4] : memref<1x18x18xf32, #tpu.memory_space<vmem>>, vector<1x18x18xf32>
    %3 = vector.shape_cast %2 : vector<1x18x18xf32> to vector<18x18xf32>
    %4 = vector.extract_strided_slice %1 {offsets = [0, 0], sizes = [16, 18], strides = [1, 1]} : vector<18x18xf32> to vector<16x18xf32>
    %5 = vector.extract_strided_slice %1 {offsets = [1, 0], sizes = [16, 18], strides = [1, 1]} : vector<18x18xf32> to vector<16x18xf32>
    %cst = arith.constant 2.000000e+00 : f32
    %6 = vector.broadcast %cst : f32 to vector<16x18xf32>
    %7 = arith.mulf %6, %5 : vector<16x18xf32>
    %8 = arith.addf %4, %7 : vector<16x18xf32>
    %9 = vector.extract_strided_slice %1 {offsets = [2, 0], sizes = [16, 18], strides = [1, 1]} : vector<18x18xf32> to vector<16x18xf32>
    %10 = arith.addf %8, %9 : vector<16x18xf32>
    %11 = vector.extract_strided_slice %1 {offsets = [0, 0], sizes = [16, 18], strides = [1, 1]} : vector<18x18xf32> to vector<16x18xf32>
    %12 = vector.extract_strided_slice %1 {offsets = [2, 0], sizes = [16, 18], strides = [1, 1]} : vector<18x18xf32> to vector<16x18xf32>
    %13 = arith.subf %11, %12 : vector<16x18xf32>
    %14 = vector.extract_strided_slice %10 {offsets = [0, 0], sizes = [16, 16], strides = [1, 1]} : vector<16x18xf32> to vector<16x16xf32>
    %15 = vector.extract_strided_slice %10 {offsets = [0, 2], sizes = [16, 16], strides = [1, 1]} : vector<16x18xf32> to vector<16x16xf32>
    %16 = arith.subf %14, %15 : vector<16x16xf32>
    %17 = vector.extract_strided_slice %13 {offsets = [0, 0], sizes = [16, 16], strides = [1, 1]} : vector<16x18xf32> to vector<16x16xf32>
    %18 = vector.extract_strided_slice %13 {offsets = [0, 1], sizes = [16, 16], strides = [1, 1]} : vector<16x18xf32> to vector<16x16xf32>
    %cst_5 = arith.constant 2.000000e+00 : f32
    %19 = vector.broadcast %cst_5 : f32 to vector<16x16xf32>
    %20 = arith.mulf %19, %18 : vector<16x16xf32>
    %21 = arith.addf %17, %20 : vector<16x16xf32>
    %22 = vector.extract_strided_slice %13 {offsets = [0, 2], sizes = [16, 16], strides = [1, 1]} : vector<16x18xf32> to vector<16x16xf32>
    %23 = arith.addf %21, %22 : vector<16x16xf32>
    %24 = math.absf %16 : vector<16x16xf32>
    %25 = math.absf %23 : vector<16x16xf32>
    %26 = arith.addf %24, %25 : vector<16x16xf32>
    %27 = vector.extract_strided_slice %3 {offsets = [0, 0], sizes = [16, 18], strides = [1, 1]} : vector<18x18xf32> to vector<16x18xf32>
    %28 = vector.extract_strided_slice %3 {offsets = [1, 0], sizes = [16, 18], strides = [1, 1]} : vector<18x18xf32> to vector<16x18xf32>
    %cst_6 = arith.constant 2.000000e+00 : f32
    %29 = vector.broadcast %cst_6 : f32 to vector<16x18xf32>
    %30 = arith.mulf %29, %28 : vector<16x18xf32>
    %31 = arith.addf %27, %30 : vector<16x18xf32>
    %32 = vector.extract_strided_slice %3 {offsets = [2, 0], sizes = [16, 18], strides = [1, 1]} : vector<18x18xf32> to vector<16x18xf32>
    %33 = arith.addf %31, %32 : vector<16x18xf32>
    %34 = vector.extract_strided_slice %3 {offsets = [0, 0], sizes = [16, 18], strides = [1, 1]} : vector<18x18xf32> to vector<16x18xf32>
    %35 = vector.extract_strided_slice %3 {offsets = [2, 0], sizes = [16, 18], strides = [1, 1]} : vector<18x18xf32> to vector<16x18xf32>
    %36 = arith.subf %34, %35 : vector<16x18xf32>
    %37 = vector.extract_strided_slice %33 {offsets = [0, 0], sizes = [16, 16], strides = [1, 1]} : vector<16x18xf32> to vector<16x16xf32>
    %38 = vector.extract_strided_slice %33 {offsets = [0, 2], sizes = [16, 16], strides = [1, 1]} : vector<16x18xf32> to vector<16x16xf32>
    %39 = arith.subf %37, %38 : vector<16x16xf32>
    %40 = vector.extract_strided_slice %36 {offsets = [0, 0], sizes = [16, 16], strides = [1, 1]} : vector<16x18xf32> to vector<16x16xf32>
    %41 = vector.extract_strided_slice %36 {offsets = [0, 1], sizes = [16, 16], strides = [1, 1]} : vector<16x18xf32> to vector<16x16xf32>
    %cst_7 = arith.constant 2.000000e+00 : f32
    %42 = vector.broadcast %cst_7 : f32 to vector<16x16xf32>
    %43 = arith.mulf %42, %41 : vector<16x16xf32>
    %44 = arith.addf %40, %43 : vector<16x16xf32>
    %45 = vector.extract_strided_slice %36 {offsets = [0, 2], sizes = [16, 16], strides = [1, 1]} : vector<16x18xf32> to vector<16x16xf32>
    %46 = arith.addf %44, %45 : vector<16x16xf32>
    %47 = math.absf %39 : vector<16x16xf32>
    %48 = math.absf %46 : vector<16x16xf32>
    %49 = arith.addf %47, %48 : vector<16x16xf32>
    %50 = arith.subf %26, %49 : vector<16x16xf32>
    %51 = arith.mulf %50, %50 : vector<16x16xf32>
    %cst_8 = arith.constant 9.99999971E-10 : f32
    %52 = vector.broadcast %cst_8 : f32 to vector<16x16xf32>
    %53 = arith.addf %51, %52 : vector<16x16xf32>
    %54 = math.sqrt %53 : vector<16x16xf32>
    %55 = vector.shape_cast %54 : vector<16x16xf32> to vector<1x16x16xf32>
    %cst_9 = arith.constant dense<0.000000e+00> : vector<1xf32>
    %56 = vector.multi_reduction <add>, %55, %cst_9 [1, 2] : vector<1x16x16xf32> to vector<1xf32>
    %57 = vector.shape_cast %56 : vector<1xf32> to vector<1x1x1xf32>
    %58 = vector.extract %57[0, 0, 0] : f32 from vector<1x1x1xf32>
    %59 = vector.broadcast %58 : f32 to vector<1x8x128xf32>
    %c0_10 = arith.constant 0 : index
    %c0_11 = arith.constant 0 : index
    %c0_12 = arith.constant 0 : index
    %60 = vector.load %arg3[%c0_10, %c0_11, %c0_12] : memref<1x8x128xf32, #tpu.memory_space<vmem>>, vector<1x8x128xf32>
    tpu.vector_store %arg3[%c0_10, %c0_11, %c0_12], %59 {strides = array<i32>} : memref<1x8x128xf32, #tpu.memory_space<vmem>>, vector<1x8x128xf32>,
    return
  }
  func.func @transform_0(%arg0: i32) -> (i32, i32, i32) {
    %c0_i32 = arith.constant 0 : i32
    %c0_i32_0 = arith.constant 0 : i32
    %c0_i32_1 = arith.constant 0 : i32
    return %arg0, %c0_i32, %c0_i32_0 : i32, i32, i32
  }
  func.func @transform_1(%arg0: i32) -> (i32, i32, i32) {
    %c0_i32 = arith.constant 0 : i32
    %c0_i32_0 = arith.constant 0 : i32
    %c0_i32_1 = arith.constant 0 : i32
    return %arg0, %c0_i32, %c0_i32_0 : i32, i32, i32
  }
  func.func @transform_2(%arg0: i32) -> (i32, i32, i32) {
    %c0_i32 = arith.constant 0 : i32
    %c0_i32_0 = arith.constant 0 : i32
    %c0_i32_1 = arith.constant 0 : i32
    return %arg0, %c0_i32, %c0_i32_0 : i32, i32, i32
  }
}

</mosaic_0001>

<llo_original>
// kernel: sobel_loss.1
$region0: #{sobel_loss.1}
  #allocation0 [shape = 'u32[]', space=smem, size = 0x4, offset = 0x4, fixed_abs, tag = 'smem constant byte address 0x4 - core index']
  #allocation1 [shape = 'u32[144,128]{1,0:T(1,128)}', space=vmem, size = 0x12000, scoped, tag = 'internal scratch']
  %s0 = inlined_call_operand.vmem [shape: f32[2,18,18], index: 0, kind: input, shape index: {}]
  %s1 = inlined_call_operand.vmem [shape: f32[2,18,18], index: 1, kind: input, shape index: {}]
  %s2 = inlined_call_operand.vmem [shape: f32[2,8,128], index: 2, kind: output, shape index: {}]
  %s3 = sld [smem:[#allocation0]]
  $region41: #{sobel_loss.1} parent=0
    _
  %s5 = ssub.s32 1, %s3
  %s6 = scalar_select 0, %s5, %s3
  loop: start=0, step=1, limit=4
  $region2: #{sobel_loss.1} parent=0 // loop_pre_header
    _
  $region3: #{sobel_loss.1} parent=0 // loop_header
    %s8 = sphi 0, %s12
    %p9 = scmp.ge.s32.totalorder %s8, 4
    %s18 = sphi 0, %s20
    %s21 = sphi 0, %s18
    %s22 = sphi 0, %s21
    %s38 = sphi 0, %s22
    %s44 = sphi 0, %s46
    %s47 = sphi 0, %s44
    %s48 = sphi 0, %s47
    %s64 = sphi 0, %s48
    %s70 = sphi 0, %s72
    %s73 = sphi 0, %s70
    %s74 = sphi 0, %s73
    %s90 = sphi 0, %s74
  $region4: #{sobel_loss.1} parent=0 // loop_header_branch
    %11 = sbr.rel (%p9) target = $region8
  $region5: #{sobel_loss.1} parent=0 // loop_body
    %s13 = ssub.s32 %s8, 1
    %s14 = ssub.s32 %s8, 2
    %s15 = sadd.s32 %s8, 1
    %s16 = ssub.s32 %s8, %s15
    %p17 = scmp.eq.s32.totalorder %s16, 0
    %s19 = sadd.s32 %s18, 1
    %s20 = scalar_select %p17, %s18, %s19
    %p23 = pneg %p17
    %p24 = scmp.eq.s32.totalorder %s8, 1
    %p25 = por %p23, %p24
    %p26 = scmp.ne.s32.totalorder %s18, %s21
    %p27 = scmp.eq.s32.totalorder %s8, 0
    %p28 = por %p26, %p27
    %p29 = scmp.ne.s32.totalorder %s18, %s21
    %p30 = scmp.eq.s32.totalorder %s13, 1
    %p31 = por %p29, %p30
    %p32 = scmp.ne.s32.totalorder %s21, %s22
    %p33 = scmp.eq.s32.totalorder %s13, 0
    %p34 = por %p32, %p33
    %p35 = scmp.ne.s32.totalorder %s21, %s22
    %p36 = scmp.eq.s32.totalorder %s14, 1
    %p37 = por %p35, %p36
    %p39 = scmp.ne.s32.totalorder %s22, %s38
    %p40 = scmp.eq.s32.totalorder %s14, 0
    %p41 = por %p39, %p40
    %s42 = ssub.s32 %s8, %s15
    %p43 = scmp.eq.s32.totalorder %s42, 0
    %s45 = sadd.s32 %s44, 1
    %s46 = scalar_select %p43, %s44, %s45
    %p49 = pneg %p43
    %p50 = scmp.eq.s32.totalorder %s8, 1
    %p51 = por %p49, %p50
    %p52 = scmp.ne.s32.totalorder %s44, %s47
    %p53 = scmp.eq.s32.totalorder %s8, 0
    %p54 = por %p52, %p53
    %p55 = scmp.ne.s32.totalorder %s44, %s47
    %p56 = scmp.eq.s32.totalorder %s13, 1
    %p57 = por %p55, %p56
    %p58 = scmp.ne.s32.totalorder %s47, %s48
    %p59 = scmp.eq.s32.totalorder %s13, 0
    %p60 = por %p58, %p59
    %p61 = scmp.ne.s32.totalorder %s47, %s48
    %p62 = scmp.eq.s32.totalorder %s14, 1
    %p63 = por %p61, %p62
    %p65 = scmp.ne.s32.totalorder %s48, %s64
    %p66 = scmp.eq.s32.totalorder %s14, 0
    %p67 = por %p65, %p66
    %s68 = ssub.s32 %s8, %s15
    %p69 = scmp.eq.s32.totalorder %s68, 0
    %s71 = sadd.s32 %s70, 1
    %s72 = scalar_select %p69, %s70, %s71
    %p75 = pneg %p69
    %p76 = scmp.eq.s32.totalorder %s8, 1
    %p77 = por %p75, %p76
    %p78 = scmp.ne.s32.totalorder %s70, %s73
    %p79 = scmp.eq.s32.totalorder %s8, 0
    %p80 = por %p78, %p79
    %p81 = scmp.ne.s32.totalorder %s70, %s73
    %p82 = scmp.eq.s32.totalorder %s13, 1
    %p83 = por %p81, %p82
    %p84 = scmp.ne.s32.totalorder %s73, %s74
    %p85 = scmp.eq.s32.totalorder %s13, 0
    %p86 = por %p84, %p85
    %p87 = scmp.ne.s32.totalorder %s73, %s74
    %p88 = scmp.eq.s32.totalorder %s14, 1
    %p89 = por %p87, %p88
    %p91 = scmp.ne.s32.totalorder %s74, %s90
    %p92 = scmp.eq.s32.totalorder %s14, 0
    %p93 = por %p91, %p92
    %p94 = scmp.le.s32.totalorder 1, %s8
    %p95 = scmp.lt.s32.totalorder %s8, 3
    %p96 = pnand %p94, %p95
    %p97 = pneg %p96
    // Predicated region
    $region9: #{sobel_loss.1} parent=5 // pred_check
      _
    $region10: #{sobel_loss.1} parent=5 // pred_check_branch
      %99 = sbr.rel (%p96) target = $region12
    $region11: #{sobel_loss.1} parent=5 // pred_region
      %s100 = ssub.s32 %s8, 1
    $region12: #{sobel_loss.1} parent=5 // pred_fallthru
      _
    %p101 = scmp.lt.s32.totalorder %s8, 2
    // Predicated region
    $region13: #{sobel_loss.1} parent=5 // pred_check
      %p102 = pneg %p101
    $region14: #{sobel_loss.1} parent=5 // pred_check_branch
      %104 = sbr.rel (%p102) target = $region16
    $region15: #{sobel_loss.1} parent=5 // pred_region
      // Predicated region
      $region17: #{sobel_loss.1} parent=15 // pred_check
        %p105 = pneg %p28
      $region18: #{sobel_loss.1} parent=15 // pred_check_branch
        %107 = sbr.rel (%p105) target = $region20
      $region19: #{sobel_loss.1} parent=15 // pred_region
        %p108 = scmp.lt.s32.totalorder %s8, 1
        %s109 = scalar_select %p108, %s8, 1
        %s110 = smul.addr %s109, 3
        %s111 = smul.addr %s110, 8
        %s112 = scalar_lea.vmem %s0, %s111
      $region20: #{sobel_loss.1} parent=15 // pred_fallthru
        _
      // Predicated region
      $region21: #{sobel_loss.1} parent=15 // pred_check
        %p113 = pneg %p54
      $region22: #{sobel_loss.1} parent=15 // pred_check_branch
        %115 = sbr.rel (%p113) target = $region24
      $region23: #{sobel_loss.1} parent=15 // pred_region
        %p116 = scmp.lt.s32.totalorder %s8, 1
        %s117 = scalar_select %p116, %s8, 1
        %s118 = smul.addr %s117, 3
        %s119 = smul.addr %s118, 8
        %s120 = scalar_lea.vmem %s1, %s119
      $region24: #{sobel_loss.1} parent=15 // pred_fallthru
        _
    $region16: #{sobel_loss.1} parent=5 // pred_fallthru
      _
    %p121 = scmp.le.s32.totalorder 1, %s8
    %p122 = scmp.lt.s32.totalorder %s8, 3
    %p123 = pnand %p121, %p122
    %p124 = pneg %p123
    // Predicated region
    $region25: #{sobel_loss.1} parent=5 // pred_check
      _
    $region26: #{sobel_loss.1} parent=5 // pred_check_branch
      %126 = sbr.rel (%p123) target = $region28
    $region27: #{sobel_loss.1} parent=5 // pred_region
      %s127 = ssub.s32 %s8, 1
      %p128 = scmp.lt.s32.totalorder %s13, 1
      %s129 = scalar_select %p128, %s13, 1
      %s130 = smul.addr %s129, 3
      %s131 = smul.addr %s130, 8
      %s132 = scalar_lea.vmem %s0, %s131
      %p133 = pneg %p34
      %p134 = pneg %p31
      %p135 = scmp.lt.s32.totalorder %s13, 1
      %s136 = scalar_select %p135, %s13, 1
      %s137 = smul.addr %s136, 3
      %s138 = smul.addr %s137, 8
      %s139 = scalar_lea.vmem %s1, %s138
      %p140 = pneg %p60
      %p141 = pneg %p57
      %p142 = pneg %p86
      %p143 = pneg %p83
      %p144 = scmp.lt.s32.totalorder %s13, 1
      %s145 = scalar_select %p144, %s13, 1
      %s146 = smul.addr %s145, 8
      %s147 = scalar_lea.vmem %s2, %s146
      %p148 = scmp.lt.s32.totalorder %s13, 1
      %s149 = scalar_select %p148, %s13, 1
      %s150 = smul.addr %s149, 3
      %s151 = smul.addr %s150, 8
      %s152 = scalar_lea.vmem %s0, %s151
      %p153 = scmp.lt.s32.totalorder %s13, 1
      %s154 = scalar_select %p153, %s13, 1
      %s155 = smul.addr %s154, 3
      %s156 = smul.addr %s155, 8
      %s157 = scalar_lea.vmem %s1, %s156
      %p158 = scmp.lt.s32.totalorder %s13, 1
      %s159 = scalar_select %p158, %s13, 1
      %s160 = smul.addr %s159, 8
      %s161 = scalar_lea.vmem %s2, %s160
      %v162 = vld [vmem:[%s152] sm:$0xff]
      %v163 = vld [vmem:[%s152 + $0x8] sm:$0xff]
      %v164 = vld [vmem:[%s152 + $0x10] sm:$0x3]
      %v165 = vld [vmem:[%s157] sm:$0xff]
      %v166 = vld [vmem:[%s157 + $0x8] sm:$0xff]
      %v167 = vld [vmem:[%s157 + $0x10] sm:$0x3]
      %v168 = vmul.f32 %v162, 2.0
      %v169 = vmul.f32 %v163, 2.0
      %v170 = vmul.f32 %v164, 2.0
      %vm174 = vcmask 1046528
      %v175 = vrot.slane %v168, 1
      %v176 = vrot.slane %v169, 1
      %v177 = vsel %vm174, %v175, %v176
      %v178 = vrot.slane %v170, 1
      %v179 = vsel %vm174, %v176, %v178
      %v182 = vadd.f32 %v162, %v177
      %v183 = vadd.f32 %v163, %v179
      %vm187 = vcmask 1045504
      %v188 = vrot.slane %v162, 2
      %v189 = vrot.slane %v163, 2
      %v190 = vsel %vm187, %v188, %v189
      %v191 = vrot.slane %v164, 2
      %v192 = vsel %vm187, %v189, %v191
      %v195 = vadd.f32 %v182, %v190
      %v196 = vadd.f32 %v183, %v192
      %v197 = vsub.f32 %v162, %v190
      %v198 = vsub.f32 %v163, %v192
      %201 = vrot.lane.b32.xlu0 %v195, 126
      %v202 = vpop.permute.xlu0 %201
      %203 = vrot.lane.b32.xlu0 %v196, 126
      %v204 = vpop.permute.xlu0 %203
      %v207 = vsub.f32 %v195, %v202
      %v208 = vsub.f32 %v196, %v204
      %v209 = vmul.f32 %v197, 2.0
      %v210 = vmul.f32 %v198, 2.0
      %213 = vrot.lane.b32.xlu0 %v209, 127
      %v214 = vpop.permute.xlu0 %213
      %215 = vrot.lane.b32.xlu0 %v210, 127
      %v216 = vpop.permute.xlu0 %215
      %v219 = vadd.f32 %v197, %v214
      %v220 = vadd.f32 %v198, %v216
      %223 = vrot.lane.b32.xlu0 %v197, 126
      %v224 = vpop.permute.xlu0 %223
      %225 = vrot.lane.b32.xlu0 %v198, 126
      %v226 = vpop.permute.xlu0 %225
      %v229 = vadd.f32 %v219, %v224
      %v230 = vadd.f32 %v220, %v226
      %v231 = vand.u32 2147483647, %v207
      %v232 = vand.u32 2147483647, %v208
      %v233 = vand.u32 2147483647, %v229
      %v234 = vand.u32 2147483647, %v230
      %v235 = vadd.f32 %v231, %v233
      %v236 = vadd.f32 %v232, %v234
      %v237 = vmul.f32 %v165, 2.0
      %v238 = vmul.f32 %v166, 2.0
      %v239 = vmul.f32 %v167, 2.0
      %v243 = vrot.slane %v237, 1
      %v244 = vrot.slane %v238, 1
      %v245 = vsel %vm174, %v243, %v244
      %v246 = vrot.slane %v239, 1
      %v247 = vsel %vm174, %v244, %v246
      %v250 = vadd.f32 %v165, %v245
      %v251 = vadd.f32 %v166, %v247
      %v255 = vrot.slane %v165, 2
      %v256 = vrot.slane %v166, 2
      %v257 = vsel %vm187, %v255, %v256
      %v258 = vrot.slane %v167, 2
      %v259 = vsel %vm187, %v256, %v258
      %v262 = vadd.f32 %v250, %v257
      %v263 = vadd.f32 %v251, %v259
      %v264 = vsub.f32 %v165, %v257
      %v265 = vsub.f32 %v166, %v259
      %268 = vrot.lane.b32.xlu0 %v262, 126
      %v269 = vpop.permute.xlu0 %268
      %270 = vrot.lane.b32.xlu0 %v263, 126
      %v271 = vpop.permute.xlu0 %270
      %v274 = vsub.f32 %v262, %v269
      %v275 = vsub.f32 %v263, %v271
      %v276 = vmul.f32 %v264, 2.0
      %v277 = vmul.f32 %v265, 2.0
      %280 = vrot.lane.b32.xlu0 %v276, 127
      %v281 = vpop.permute.xlu0 %280
      %282 = vrot.lane.b32.xlu0 %v277, 127
      %v283 = vpop.permute.xlu0 %282
      %v286 = vadd.f32 %v264, %v281
      %v287 = vadd.f32 %v265, %v283
      %290 = vrot.lane.b32.xlu0 %v264, 126
      %v291 = vpop.permute.xlu0 %290
      %292 = vrot.lane.b32.xlu0 %v265, 126
      %v293 = vpop.permute.xlu0 %292
      %v296 = vadd.f32 %v286, %v291
      %v297 = vadd.f32 %v287, %v293
      %v298 = vand.u32 2147483647, %v274
      %v299 = vand.u32 2147483647, %v275
      %v300 = vand.u32 2147483647, %v296
      %v301 = vand.u32 2147483647, %v297
      %v302 = vadd.f32 %v298, %v300
      %v303 = vadd.f32 %v299, %v301
      %v304 = vsub.f32 %v235, %v302
      %v305 = vsub.f32 %v236, %v303
      %v306 = vmul.f32 %v304, %v304
      %v307 = vmul.f32 %v305, %v305
      %v308 = vadd.f32 %v306, 1e-09
      %v309 = vadd.f32 %v307, 1e-09
      %v310 = vrsqrt.pop %v308
      %v311 = vmul.f32 %v308, %v310
      %vm312 = vcmp.eq.f32.partialorder %v308, inf
      %v313 = vsel %vm312, %v308, %v311
      %vm314 = vcmp.eq.f32.partialorder %v308, 0.0
      %v315 = vand.u32 %v308, 2147483648
      %v316 = vsel %vm314, %v315, %v313
      %v317 = vrsqrt.pop %v309
      %v318 = vmul.f32 %v309, %v317
      %vm319 = vcmp.eq.f32.partialorder %v309, inf
      %v320 = vsel %vm319, %v309, %v318
      %vm321 = vcmp.eq.f32.partialorder %v309, 0.0
      %v322 = vand.u32 %v309, 2147483648
      %v323 = vsel %vm321, %v322, %v320
      %vm324 = vcmask 130048
      %v325 = vsel %vm324, %v316, 0.0
      %v326 = vsel %vm324, %v323, 0.0
      %v327 = vadd.f32 %v325, %v326
      %328 = vadd.xlane.f32.xlu0 %v327
      %v329 = vpop.xlane.xlu0 %328
      %v330 = vrot.slane %v329, 4
      %v331 = vadd.f32 %v329, %v330
      %v332 = vrot.slane %v331, 2
      %v333 = vadd.f32 %v331, %v332
      %v334 = vrot.slane %v333, 1
      %v335 = vadd.f32 %v333, %v334
      %s336 = vtos %v335
      %v337 = vstv %s336
      %338 = vst [vmem:[%s161] sm:$0xff] %v337
      %p339 = scmp.lt.s32.totalorder %s13, 1
      %s340 = scalar_select %p339, %s13, 1
      %s341 = smul.addr %s340, 8
      %s342 = scalar_lea.vmem %s2, %s341
      // Predicated region
      $region29: #{sobel_loss.1} parent=27 // pred_check
        %p343 = pneg %p83
      $region30: #{sobel_loss.1} parent=27 // pred_check_branch
        %345 = sbr.rel (%p343) target = $region32
      $region31: #{sobel_loss.1} parent=27 // pred_region
        _
      $region32: #{sobel_loss.1} parent=27 // pred_fallthru
        _
    $region28: #{sobel_loss.1} parent=5 // pred_fallthru
      _
    %p346 = scmp.le.s32.totalorder 2, %s8
    // Predicated region
    $region33: #{sobel_loss.1} parent=5 // pred_check
      %p347 = pneg %p346
    $region34: #{sobel_loss.1} parent=5 // pred_check_branch
      %349 = sbr.rel (%p347) target = $region36
    $region35: #{sobel_loss.1} parent=5 // pred_region
      %s350 = ssub.s32 %s8, 2
      // Predicated region
      $region37: #{sobel_loss.1} parent=35 // pred_check
        %p351 = pneg %p89
      $region38: #{sobel_loss.1} parent=35 // pred_check_branch
        %353 = sbr.rel (%p351) target = $region40
      $region39: #{sobel_loss.1} parent=35 // pred_region
        %p354 = scmp.lt.s32.totalorder %s14, 1
        %s355 = scalar_select %p354, %s14, 1
        %s356 = smul.addr %s355, 8
        %s357 = scalar_lea.vmem %s2, %s356
      $region40: #{sobel_loss.1} parent=35 // pred_fallthru
        _
    $region36: #{sobel_loss.1} parent=5 // pred_fallthru
      _
  $region6: #{sobel_loss.1} parent=0 // loop_footer
    %s12 = sadd.s32 1, %s8
  $region7: #{sobel_loss.1} parent=0 // loop_footer_branch
    %7 = sbr.rel target = $region3
  $region8: #{sobel_loss.1} parent=0 // loop_exit
    _

</llo_original>
